<compile_context>
chip_gen: v5e
topology: v5e:2x2
jax: 0.10.0
libtpu: 0.0.40
codegen_flags: <defaults>
</compile_context>

<pallas_src>
import math

import jax
import jax.numpy as jnp
import numpy as np
from jax.experimental import pallas as pl
from jax.experimental.pallas import tpu as pltpu


# --------------------------------------------------------------------------
# Kernel: whole teacher-forced decode (T steps) in one invocation.
# All refs are full-array VMEM-resident blocks; hidden state is a loop carry.
# --------------------------------------------------------------------------
def _decoder_kernel(w1e_ref, encwih_ref, gix_ref, h0_ref,
                    vrow_ref, wh_ref, bhh_ref,
                    f1w_ref, f1b_ref, f2w_ref, f2b_ref,
                    out_ref, hout_ref, aw_ref):
    T = gix_ref.shape[0]
    H = h0_ref.shape[-1]

    # Load the small resident operands once (loop-invariant).
    w1e = w1e_ref[...]          # (B, L, H)   W1(enc) + b1 + b2
    encwih = encwih_ref[...]    # (B, L, 3H)  enc @ W_ih[context rows]
    vrow = vrow_ref[...]        # (1, H)
    wh = wh_ref[...]            # (H, 4H)     [W2 | W_hh]  (lane-dense, 128 cols)
    bhh = bhh_ref[...]          # (1, 3H)
    f1w = f1w_ref[...]
    f1b = f1b_ref[...]
    f2w = f2w_ref[...]
    f2b = f2b_ref[...]

    def step(t, h):
        # ---------------- attention ----------------
        # fused h projection: h @ [W2 | W_hh] -> (B, H + 3H)
        hproj = jnp.dot(h, wh, preferred_element_type=jnp.float32)
        w2h = hproj[:, :H]                       # attention part
        gh = hproj[:, H:] + bhh                  # GRU hidden gates (B, 3H)

        score = jnp.tanh(w1e + w2h[:, None, :])  # (B, L, H)
        # V projection as VPU multiply + lane reduce (avoid an N=1 MXU matmul)
        logits = jnp.sum(score * vrow[None], axis=-1)          # (B, L)
        m = jnp.max(logits, axis=1, keepdims=True)
        e = jnp.exp(logits - m)
        aw = e / jnp.sum(e, axis=1, keepdims=True)             # exact softmax (B, L)

        # ---------------- GRU cell (PyTorch gate order r, z, n) ----------------
        # context @ W_ih[:H]  ==  sum_l aw[b,l] * (enc[b,l] @ W_ih[:H])  (precomputed)
        gi = jnp.sum(aw[:, :, None] * encwih, axis=1) + gix_ref[t]   # (B, 3H)
        s = gi + gh
        rz = jax.nn.sigmoid(s[:, :2 * H])        # fused r,z sigmoid
        r = rz[:, :H]
        z = rz[:, H:]
        n = jnp.tanh(gi[:, 2 * H:] + r * gh[:, 2 * H:])
        h_new = (1.0 - z) * n + z * h            # (B, H)

        # ---------------- FC head: Linear -> LeakyReLU -> Linear ----------------
        y = jnp.dot(h_new, f1w, preferred_element_type=jnp.float32) + f1b
        y = jnp.where(y > 0, y, 0.01 * y)        # LeakyReLU(0.01)
        out = jnp.dot(y, f2w, preferred_element_type=jnp.float32) + f2b

        out_ref[t] = out                         # VMEM-resident slab, flushed at end
        aw_ref[t] = aw
        return h_new

    h_final = jax.lax.fori_loop(0, T, step, h0_ref[...], unroll=True)
    hout_ref[...] = h_final                      # written once, after the loop


# --------------------------------------------------------------------------
# Wrapper
# --------------------------------------------------------------------------
def decode_steps(params, tokens_bt, hidden, enc_output):
    """Run T teacher-forced decode steps inside ONE Pallas kernel.

    tokens_bt: (B, T) int32, hidden: (1, B, H) f32, enc_output: (B, L, H) f32.
    Returns out_all (T, B, O), hidden_new (1, B, H), aw_all (T, B, L).
    T == 1 reproduces Decoder.forward exactly.
    """
    B, T = tokens_bt.shape
    L = enc_output.shape[1]
    H = hidden.shape[-1]
    E = params['embedding'].shape[1]
    O = params['fc2_b'].shape[-1]
    hp = jax.lax.Precision.HIGHEST

    # ---- loop-invariant precompute (done once, outside the recurrence) ----
    b12 = params['b1'] + params['b2']                                # fold attention biases
    w1e = (jnp.dot(enc_output.reshape(B * L, H), params['w1'], precision=hp)
           + b12).reshape(B, L, H)                                   # W1(enc) + b1 + b2
    enc_wih = jnp.einsum('blh,hg->blg', enc_output, params['w_ih'][:H],
                         precision=hp)                               # (B, L, 3H)
    x_emb = params['embedding'][tokens_bt.T]                         # (T, B, E)
    gi_x = (jnp.dot(x_emb.reshape(T * B, E), params['w_ih'][H:], precision=hp)
            + params['b_ih']).reshape(T, B, 3 * H)                   # x-half of GRU gates
    wh = jnp.concatenate([params['w2'], params['w_hh']], axis=1)     # (H, 4H) fused h-proj
    vrow = params['vw'].T                                            # (1, H)
    h0 = hidden[0]                                                   # (B, H)  (num_layers == 1)

    args = (w1e, enc_wih, gi_x, h0, vrow, wh, params['b_hh'],
            params['fc1_w'], params['fc1_b'], params['fc2_w'], params['fc2_b'])

    def const_spec(shape):                                           # full array, VMEM resident
        zeros = (0,) * len(shape)
        return pl.BlockSpec(tuple(shape), lambda i, z=zeros: z)

    out_all, h_out, aw_all = pl.pallas_call(
        _decoder_kernel,
        grid_spec=pltpu.PrefetchScalarGridSpec(
            num_scalar_prefetch=0,
            grid=(1,),                                               # whole decode = one step
            in_specs=[const_spec(a.shape) for a in args],
            out_specs=[const_spec((T, B, O)),
                       const_spec((B, H)),
                       const_spec((T, B, L))]),
        out_shape=(jax.ShapeDtypeStruct((T, B, O), jnp.float32),
                   jax.ShapeDtypeStruct((B, H), jnp.float32),
                   jax.ShapeDtypeStruct((T, B, L), jnp.float32)),
        compiler_params=pltpu.CompilerParams(
            dimension_semantics=("arbitrary",)),
    )(*args)

    return out_all, h_out[None], aw_all


def decoder_forward(params, tokens, hidden, enc_output):
    """Exact equivalent of Decoder.forward: tokens (B,1) -> one decode step."""
    out_all, h_new, aw_all = decode_steps(params, tokens, hidden, enc_output)
    # match torch shapes: output (B, output_dim), hidden (1, B, H), aw (B, L, 1)
    return out_all[0], h_new, aw_all[0][:, :, None]


# --------------------------------------------------------------------------
# Deterministic parameter init (shapes from Decoder.__init__: gru, 1 layer, attention)
# --------------------------------------------------------------------------
def init_params(key, output_dim, embed_dim, hidden_dim):
    ks = list(jax.random.split(key, 16))

    def u(k, shape, scale):
        return jax.random.uniform(k, shape, jnp.float32, -scale, scale)

    sh = 1.0 / math.sqrt(hidden_dim)
    se = 1.0 / math.sqrt(embed_dim)
    si = 1.0 / math.sqrt(embed_dim + hidden_dim)
    return dict(
        embedding=u(ks[0], (output_dim, embed_dim), 1.0),
        # attention: W1 (H_enc -> H), W2 (H -> H), V (H -> 1); stored transposed
        w1=u(ks[1], (hidden_dim, hidden_dim), sh), b1=u(ks[2], (1, hidden_dim), sh),
        w2=u(ks[3], (hidden_dim, hidden_dim), sh), b2=u(ks[4], (1, hidden_dim), sh),
        vw=u(ks[5], (hidden_dim, 1), sh),          vb=u(ks[6], (1, 1), sh),
        # GRU: input = [context (H) | embed (E)], gates stacked [r, z, n]; transposed
        w_ih=u(ks[7], (hidden_dim + embed_dim, 3 * hidden_dim), si),
        b_ih=u(ks[8], (1, 3 * hidden_dim), sh),
        w_hh=u(ks[9], (hidden_dim, 3 * hidden_dim), sh),
        b_hh=u(ks[10], (1, 3 * hidden_dim), sh),
        # fc head: Linear(H, E) -> LeakyReLU -> Linear(E, output_dim); transposed
        fc1_w=u(ks[11], (hidden_dim, embed_dim), sh), fc1_b=u(ks[12], (1, embed_dim), sh),
        fc2_w=u(ks[13], (embed_dim, output_dim), se), fc2_b=u(ks[14], (1, output_dim), se),
    )


# --------------------------------------------------------------------------
# Pure-JAX reference (same math as the PyTorch module, high precision)
# --------------------------------------------------------------------------
def decoder_reference(params, tokens, hidden, enc_output):
    hp = jax.lax.Precision.HIGHEST
    x = params['embedding'][tokens[:, 0]]
    h = hidden[0]
    H = h.shape[-1]
    w1e = jnp.einsum('blh,hd->bld', enc_output, params['w1'], precision=hp) + params['b1'][None]
    w2h = jnp.dot(h, params['w2'], precision=hp) + params['b2']
    score = jnp.tanh(w1e + w2h[:, None, :])
    logits = jnp.einsum('blh,hd->bld', score, params['vw'], precision=hp)[..., 0] + params['vb']
    aw = jax.nn.softmax(logits, axis=1)
    context = jnp.sum(aw[:, :, None] * enc_output, axis=1)
    rnn_in = jnp.concatenate([context, x], axis=-1)
    gi = jnp.dot(rnn_in, params['w_ih'], precision=hp) + params['b_ih']
    gh = jnp.dot(h, params['w_hh'], precision=hp) + params['b_hh']
    r = jax.nn.sigmoid(gi[:, :H] + gh[:, :H])
    z = jax.nn.sigmoid(gi[:, H:2 * H] + gh[:, H:2 * H])
    n = jnp.tanh(gi[:, 2 * H:] + r * gh[:, 2 * H:])
    h_new = (1.0 - z) * n + z * h
    y = jnp.dot(h_new, params['fc1_w'], precision=hp) + params['fc1_b']
    y = jnp.where(y > 0, y, 0.01 * y)
    out = jnp.dot(y, params['fc2_w'], precision=hp) + params['fc2_b']
    return out, h_new[None], aw[:, :, None]


def reference_decode_steps(params, tokens_bt, hidden, enc_output):
    """Step-by-step reference for the in-kernel multi-step decode (teacher-forced)."""
    B, T = tokens_bt.shape
    h = hidden
    outs, aws = [], []
    for t in range(T):
        out, h, aw = decoder_reference(params, tokens_bt[:, t:t + 1], h, enc_output)
        outs.append(out)
        aws.append(aw[..., 0])
    return jnp.stack(outs, 0), h, jnp.stack(aws, 0)


# --------------------------------------------------------------------------
if __name__ == "__main__":
    OUTPUT_DIM = 16   # vocab size
    EMBED_DIM = 32
    HIDDEN_DIM = 32
    BATCH = 2
    MAX_LEN = 8
    T_STEPS = 4

    key = jax.random.PRNGKey(0)
    kp, kt, kh, ke, kt2 = jax.random.split(key, 5)

    params = init_params(kp, OUTPUT_DIM, EMBED_DIM, HIDDEN_DIM)
    tokens = jax.random.randint(kt, (BATCH, 1), 0, OUTPUT_DIM, dtype=jnp.int32)
    hidden = jax.random.normal(kh, (1, BATCH, HIDDEN_DIM), dtype=jnp.float32)
    enc_output = jax.random.normal(ke, (BATCH, MAX_LEN, HIDDEN_DIM), dtype=jnp.float32)

    # ---- single decode step (== Decoder.forward) ----
    out, h_new, aw = decoder_forward(params, tokens, hidden, enc_output)
    jax.block_until_ready((out, h_new, aw))

    ref_out, ref_h, ref_aw = decoder_reference(params, tokens, hidden, enc_output)
    np.testing.assert_allclose(np.asarray(out), np.asarray(ref_out), rtol=1e-2, atol=1e-2)
    np.testing.assert_allclose(np.asarray(h_new), np.asarray(ref_h), rtol=1e-2, atol=1e-2)
    np.testing.assert_allclose(np.asarray(aw), np.asarray(ref_aw), rtol=1e-2, atol=1e-2)
    assert out.shape == (BATCH, OUTPUT_DIM)
    assert h_new.shape == (1, BATCH, HIDDEN_DIM)
    assert aw.shape == (BATCH, MAX_LEN, 1)

    # ---- multi-step teacher-forced decode, loop fully inside the kernel ----
    tokens_seq = jax.random.randint(kt2, (BATCH, T_STEPS), 0, OUTPUT_DIM, dtype=jnp.int32)
    out_seq, h_seq, aw_seq = decode_steps(params, tokens_seq, hidden, enc_output)
    jax.block_until_ready((out_seq, h_seq, aw_seq))

    ref_out_seq, ref_h_seq, ref_aw_seq = reference_decode_steps(
        params, tokens_seq, hidden, enc_output)
    np.testing.assert_allclose(np.asarray(out_seq), np.asarray(ref_out_seq), rtol=1e-2, atol=1e-2)
    np.testing.assert_allclose(np.asarray(h_seq), np.asarray(ref_h_seq), rtol=1e-2, atol=1e-2)
    np.testing.assert_allclose(np.asarray(aw_seq), np.asarray(ref_aw_seq), rtol=1e-2, atol=1e-2)
    assert out_seq.shape == (T_STEPS, BATCH, OUTPUT_DIM)
    assert h_seq.shape == (1, BATCH, HIDDEN_DIM)
    assert aw_seq.shape == (T_STEPS, BATCH, MAX_LEN)

    print("KERNEL_OK")
</pallas_src>

<mosaic_0001>
module attributes {stable_mosaic.version = 11 : i64} {
  func.func @_decoder_kernel(%arg0: i32, %arg1: memref<2x8x32xf32, #tpu.memory_space<vmem>>, %arg2: memref<2x8x96xf32, #tpu.memory_space<vmem>>, %arg3: memref<1x2x96xf32, #tpu.memory_space<vmem>>, %arg4: memref<2x32xf32, #tpu.memory_space<vmem>>, %arg5: memref<1x32xf32, #tpu.memory_space<vmem>>, %arg6: memref<32x128xf32, #tpu.memory_space<vmem>>, %arg7: memref<1x96xf32, #tpu.memory_space<vmem>>, %arg8: memref<32x32xf32, #tpu.memory_space<vmem>>, %arg9: memref<1x32xf32, #tpu.memory_space<vmem>>, %arg10: memref<32x16xf32, #tpu.memory_space<vmem>>, %arg11: memref<1x16xf32, #tpu.memory_space<vmem>>, %arg12: memref<1x2x16xf32, #tpu.memory_space<vmem>>, %arg13: memref<2x32xf32, #tpu.memory_space<vmem>>, %arg14: memref<1x2x8xf32, #tpu.memory_space<vmem>>) attributes {dimension_semantics = [#tpu.dimension_semantics<arbitrary>], iteration_bounds = array<i64: 1>, scalar_prefetch = 0 : i64, scratch_operands = 0 : i64, tpu.core_type = #tpu.core_type<tc>, window_params = [{pipeline_mode = #tpu.pipeline_mode<synchronous>, transform_indices = @transform_0, window_bounds = array<i64: 2, 8, 32>}, {pipeline_mode = #tpu.pipeline_mode<synchronous>, transform_indices = @transform_1, window_bounds = array<i64: 2, 8, 96>}, {pipeline_mode = #tpu.pipeline_mode<synchronous>, transform_indices = @transform_2, window_bounds = array<i64: 1, 2, 96>}, {pipeline_mode = #tpu.pipeline_mode<synchronous>, transform_indices = @transform_3, window_bounds = array<i64: 2, 32>}, {pipeline_mode = #tpu.pipeline_mode<synchronous>, transform_indices = @transform_4, window_bounds = array<i64: 1, 32>}, {pipeline_mode = #tpu.pipeline_mode<synchronous>, transform_indices = @transform_5, window_bounds = array<i64: 32, 128>}, {pipeline_mode = #tpu.pipeline_mode<synchronous>, transform_indices = @transform_6, window_bounds = array<i64: 1, 96>}, {pipeline_mode = #tpu.pipeline_mode<synchronous>, transform_indices = @transform_7, window_bounds = array<i64: 32, 32>}, {pipeline_mode = #tpu.pipeline_mode<synchronous>, transform_indices = @transform_8, window_bounds = array<i64: 1, 32>}, {pipeline_mode = #tpu.pipeline_mode<synchronous>, transform_indices = @transform_9, window_bounds = array<i64: 32, 16>}, {pipeline_mode = #tpu.pipeline_mode<synchronous>, transform_indices = @transform_10, window_bounds = array<i64: 1, 16>}, {pipeline_mode = #tpu.pipeline_mode<synchronous>, transform_indices = @transform_11, window_bounds = array<i64: 1, 2, 16>}, {pipeline_mode = #tpu.pipeline_mode<synchronous>, transform_indices = @transform_12, window_bounds = array<i64: 2, 32>}, {pipeline_mode = #tpu.pipeline_mode<synchronous>, transform_indices = @transform_13, window_bounds = array<i64: 1, 2, 8>}]} {
    %c0 = arith.constant 0 : index
    %c0_0 = arith.constant 0 : index
    %c0_1 = arith.constant 0 : index
    %0 = vector.load %arg1[%c0, %c0_0, %c0_1] : memref<2x8x32xf32, #tpu.memory_space<vmem>>, vector<2x8x32xf32>
    %c0_2 = arith.constant 0 : index
    %c0_3 = arith.constant 0 : index
    %c0_4 = arith.constant 0 : index
    %1 = vector.load %arg2[%c0_2, %c0_3, %c0_4] : memref<2x8x96xf32, #tpu.memory_space<vmem>>, vector<2x8x96xf32>
    %c0_5 = arith.constant 0 : index
    %c0_6 = arith.constant 0 : index
    %2 = vector.load %arg5[%c0_5, %c0_6] : memref<1x32xf32, #tpu.memory_space<vmem>>, vector<1x32xf32>
    %c0_7 = arith.constant 0 : index
    %c0_8 = arith.constant 0 : index
    %3 = vector.load %arg6[%c0_7, %c0_8] : memref<32x128xf32, #tpu.memory_space<vmem>>, vector<32x128xf32>
    %c0_9 = arith.constant 0 : index
    %c0_10 = arith.constant 0 : index
    %4 = vector.load %arg7[%c0_9, %c0_10] : memref<1x96xf32, #tpu.memory_space<vmem>>, vector<1x96xf32>
    %c0_11 = arith.constant 0 : index
    %c0_12 = arith.constant 0 : index
    %5 = vector.load %arg8[%c0_11, %c0_12] : memref<32x32xf32, #tpu.memory_space<vmem>>, vector<32x32xf32>
    %c0_13 = arith.constant 0 : index
    %c0_14 = arith.constant 0 : index
    %6 = vector.load %arg9[%c0_13, %c0_14] : memref<1x32xf32, #tpu.memory_space<vmem>>, vector<1x32xf32>
    %c0_15 = arith.constant 0 : index
    %c0_16 = arith.constant 0 : index
    %7 = vector.load %arg10[%c0_15, %c0_16] : memref<32x16xf32, #tpu.memory_space<vmem>>, vector<32x16xf32>
    %c0_17 = arith.constant 0 : index
    %c0_18 = arith.constant 0 : index
    %8 = vector.load %arg11[%c0_17, %c0_18] : memref<1x16xf32, #tpu.memory_space<vmem>>, vector<1x16xf32>
    %c0_19 = arith.constant 0 : index
    %c0_20 = arith.constant 0 : index
    %9 = vector.load %arg4[%c0_19, %c0_20] : memref<2x32xf32, #tpu.memory_space<vmem>>, vector<2x32xf32>
    %c0_i32 = arith.constant 0 : i32
    %cst = arith.constant dense<0.000000e+00> : vector<2x128xf32>
    %10 = tpu.matmul %9, %3, %cst {dimension_numbers = #tpu.dot_dimension_numbers<[1], [0], [0], [1], [0, 0, 1, 1], [], []>} : vector<2x32xf32>, vector<32x128xf32>, vector<2x128xf32> -> vector<2x128xf32>
    %11 = vector.extract_strided_slice %10 {offsets = [0, 0], sizes = [2, 32], strides = [1, 1]} : vector<2x128xf32> to vector<2x32xf32>
    %12 = vector.extract_strided_slice %10 {offsets = [0, 32], sizes = [2, 96], strides = [1, 1]} : vector<2x128xf32> to vector<2x96xf32>
    %13 = vector.broadcast %4 : vector<1x96xf32> to vector<2x96xf32>
    %14 = arith.addf %12, %13 : vector<2x96xf32>
    %15 = vector.shape_cast %11 : vector<2x32xf32> to vector<2x1x32xf32>
    %16 = vector.broadcast %15 : vector<2x1x32xf32> to vector<2x8x32xf32>
    %17 = arith.addf %0, %16 : vector<2x8x32xf32>
    %18 = math.tanh %17 : vector<2x8x32xf32>
    %19 = vector.shape_cast %2 : vector<1x32xf32> to vector<1x1x32xf32>
    %20 = vector.broadcast %19 : vector<1x1x32xf32> to vector<2x8x32xf32>
    %21 = arith.mulf %18, %20 : vector<2x8x32xf32>
    %cst_21 = arith.constant dense<0.000000e+00> : vector<2x8xf32>
    %22 = vector.multi_reduction <add>, %21, %cst_21 [2] : vector<2x8x32xf32> to vector<2x8xf32>
    %cst_22 = arith.constant dense<0xFF800000> : vector<2xf32>
    %23 = vector.multi_reduction <maximumf>, %22, %cst_22 [1] : vector<2x8xf32> to vector<2xf32>
    %24 = vector.shape_cast %23 : vector<2xf32> to vector<2x1xf32>
    %25 = vector.broadcast %24 : vector<2x1xf32> to vector<2x8xf32>
    %26 = arith.subf %22, %25 : vector<2x8xf32>
    %27 = math.exp %26 : vector<2x8xf32>
    %cst_23 = arith.constant dense<0.000000e+00> : vector<2xf32>
    %28 = vector.multi_reduction <add>, %27, %cst_23 [1] : vector<2x8xf32> to vector<2xf32>
    %29 = vector.shape_cast %28 : vector<2xf32> to vector<2x1xf32>
    %30 = vector.broadcast %29 : vector<2x1xf32> to vector<2x8xf32>
    %31 = arith.divf %27, %30 : vector<2x8xf32>
    %32 = vector.shape_cast %31 : vector<2x8xf32> to vector<2x8x1xf32>
    %33 = vector.broadcast %32 : vector<2x8x1xf32> to vector<2x8x96xf32>
    %34 = arith.mulf %33, %1 : vector<2x8x96xf32>
    %cst_24 = arith.constant dense<0.000000e+00> : vector<2x96xf32>
    %35 = vector.multi_reduction <add>, %34, %cst_24 [1] : vector<2x8x96xf32> to vector<2x96xf32>
    %36 = arith.index_cast %c0_i32 : i32 to index
    %c0_25 = arith.constant 0 : index
    %c0_26 = arith.constant 0 : index
    %37 = vector.load %arg3[%36, %c0_25, %c0_26] : memref<1x2x96xf32, #tpu.memory_space<vmem>>, vector<1x2x96xf32>
    %38 = vector.shape_cast %37 : vector<1x2x96xf32> to vector<2x96xf32>
    %39 = arith.addf %35, %38 : vector<2x96xf32>
    %40 = arith.addf %39, %14 : vector<2x96xf32>
    %41 = vector.extract_strided_slice %40 {offsets = [0, 0], sizes = [2, 64], strides = [1, 1]} : vector<2x96xf32> to vector<2x64xf32>
    %42 = arith.negf %41 : vector<2x64xf32>
    %43 = math.exp %42 : vector<2x64xf32>
    %cst_27 = arith.constant 1.000000e+00 : f32
    %44 = vector.broadcast %cst_27 : f32 to vector<2x64xf32>
    %45 = arith.addf %44, %43 : vector<2x64xf32>
    %46 = arith.divf %44, %45 : vector<2x64xf32>
    %47 = vector.extract_strided_slice %46 {offsets = [0, 0], sizes = [2, 32], strides = [1, 1]} : vector<2x64xf32> to vector<2x32xf32>
    %48 = vector.extract_strided_slice %46 {offsets = [0, 32], sizes = [2, 32], strides = [1, 1]} : vector<2x64xf32> to vector<2x32xf32>
    %49 = vector.extract_strided_slice %39 {offsets = [0, 64], sizes = [2, 32], strides = [1, 1]} : vector<2x96xf32> to vector<2x32xf32>
    %50 = vector.extract_strided_slice %14 {offsets = [0, 64], sizes = [2, 32], strides = [1, 1]} : vector<2x96xf32> to vector<2x32xf32>
    %51 = arith.mulf %47, %50 : vector<2x32xf32>
    %52 = arith.addf %49, %51 : vector<2x32xf32>
    %53 = math.tanh %52 : vector<2x32xf32>
    %cst_28 = arith.constant 1.000000e+00 : f32
    %54 = vector.broadcast %cst_28 : f32 to vector<2x32xf32>
    %55 = arith.subf %54, %48 : vector<2x32xf32>
    %56 = arith.mulf %55, %53 : vector<2x32xf32>
    %57 = arith.mulf %48, %9 : vector<2x32xf32>
    %58 = arith.addf %56, %57 : vector<2x32xf32>
    %cst_29 = arith.constant dense<0.000000e+00> : vector<2x32xf32>
    %59 = tpu.matmul %58, %5, %cst_29 {dimension_numbers = #tpu.dot_dimension_numbers<[1], [0], [0], [1], [0, 0, 1, 1], [], []>} : vector<2x32xf32>, vector<32x32xf32>, vector<2x32xf32> -> vector<2x32xf32>
    %60 = vector.broadcast %6 : vector<1x32xf32> to vector<2x32xf32>
    %61 = arith.addf %59, %60 : vector<2x32xf32>
    %cst_30 = arith.constant 0.000000e+00 : f32
    %62 = vector.broadcast %cst_30 : f32 to vector<2x32xf32>
    %63 = arith.cmpf ogt, %61, %62 : vector<2x32xf32>
    %cst_31 = arith.constant 0.00999999977 : f32
    %64 = vector.broadcast %cst_31 : f32 to vector<2x32xf32>
    %65 = arith.mulf %64, %61 : vector<2x32xf32>
    %66 = arith.select %63, %61, %65 : vector<2x32xi1>, vector<2x32xf32>
    %cst_32 = arith.constant dense<0.000000e+00> : vector<2x16xf32>
    %67 = tpu.matmul %66, %7, %cst_32 {dimension_numbers = #tpu.dot_dimension_numbers<[1], [0], [0], [1], [0, 0, 1, 1], [], []>} : vector<2x32xf32>, vector<32x16xf32>, vector<2x16xf32> -> vector<2x16xf32>
    %68 = vector.broadcast %8 : vector<1x16xf32> to vector<2x16xf32>
    %69 = arith.addf %67, %68 : vector<2x16xf32>
    %70 = arith.index_cast %c0_i32 : i32 to index
    %c0_33 = arith.constant 0 : index
    %c0_34 = arith.constant 0 : index
    %71 = vector.load %arg12[%70, %c0_33, %c0_34] : memref<1x2x16xf32, #tpu.memory_space<vmem>>, vector<1x2x16xf32>
    %72 = vector.shape_cast %71 : vector<1x2x16xf32> to vector<2x16xf32>
    %73 = vector.shape_cast %69 : vector<2x16xf32> to vector<1x2x16xf32>
    tpu.vector_store %arg12[%70, %c0_33, %c0_34], %73 {strides = array<i32>} : memref<1x2x16xf32, #tpu.memory_space<vmem>>, vector<1x2x16xf32>,
    %74 = arith.index_cast %c0_i32 : i32 to index
    %c0_35 = arith.constant 0 : index
    %c0_36 = arith.constant 0 : index
    %75 = vector.load %arg14[%74, %c0_35, %c0_36] : memref<1x2x8xf32, #tpu.memory_space<vmem>>, vector<1x2x8xf32>
    %76 = vector.shape_cast %75 : vector<1x2x8xf32> to vector<2x8xf32>
    %77 = vector.shape_cast %31 : vector<2x8xf32> to vector<1x2x8xf32>
    tpu.vector_store %arg14[%74, %c0_35, %c0_36], %77 {strides = array<i32>} : memref<1x2x8xf32, #tpu.memory_space<vmem>>, vector<1x2x8xf32>,
    %c1_i32 = arith.constant 1 : i32
    %c0_37 = arith.constant 0 : index
    %c0_38 = arith.constant 0 : index
    %78 = vector.load %arg13[%c0_37, %c0_38] : memref<2x32xf32, #tpu.memory_space<vmem>>, vector<2x32xf32>
    tpu.vector_store %arg13[%c0_37, %c0_38], %58 {strides = array<i32>} : memref<2x32xf32, #tpu.memory_space<vmem>>, vector<2x32xf32>,
    return
  }
  func.func @transform_0(%arg0: i32) -> (i32, i32, i32) {
    %c0_i32 = arith.constant 0 : i32
    %c0_i32_0 = arith.constant 0 : i32
    %c0_i32_1 = arith.constant 0 : i32
    %c0_i32_2 = arith.constant 0 : i32
    return %c0_i32, %c0_i32_0, %c0_i32_1 : i32, i32, i32
  }
  func.func @transform_1(%arg0: i32) -> (i32, i32, i32) {
    %c0_i32 = arith.constant 0 : i32
    %c0_i32_0 = arith.constant 0 : i32
    %c0_i32_1 = arith.constant 0 : i32
    %c0_i32_2 = arith.constant 0 : i32
    return %c0_i32, %c0_i32_0, %c0_i32_1 : i32, i32, i32
  }
  func.func @transform_2(%arg0: i32) -> (i32, i32, i32) {
    %c0_i32 = arith.constant 0 : i32
    %c0_i32_0 = arith.constant 0 : i32
    %c0_i32_1 = arith.constant 0 : i32
    %c0_i32_2 = arith.constant 0 : i32
    return %c0_i32, %c0_i32_0, %c0_i32_1 : i32, i32, i32
  }
  func.func @transform_3(%arg0: i32) -> (i32, i32) {
    %c0_i32 = arith.constant 0 : i32
    %c0_i32_0 = arith.constant 0 : i32
    %c0_i32_1 = arith.constant 0 : i32
    return %c0_i32, %c0_i32_0 : i32, i32
  }
  func.func @transform_4(%arg0: i32) -> (i32, i32) {
    %c0_i32 = arith.constant 0 : i32
    %c0_i32_0 = arith.constant 0 : i32
    %c0_i32_1 = arith.constant 0 : i32
    return %c0_i32, %c0_i32_0 : i32, i32
  }
  func.func @transform_5(%arg0: i32) -> (i32, i32) {
    %c0_i32 = arith.constant 0 : i32
    %c0_i32_0 = arith.constant 0 : i32
    %c0_i32_1 = arith.constant 0 : i32
    return %c0_i32, %c0_i32_0 : i32, i32
  }
  func.func @transform_6(%arg0: i32) -> (i32, i32) {
    %c0_i32 = arith.constant 0 : i32
    %c0_i32_0 = arith.constant 0 : i32
    %c0_i32_1 = arith.constant 0 : i32
    return %c0_i32, %c0_i32_0 : i32, i32
  }
  func.func @transform_7(%arg0: i32) -> (i32, i32) {
    %c0_i32 = arith.constant 0 : i32
    %c0_i32_0 = arith.constant 0 : i32
    %c0_i32_1 = arith.constant 0 : i32
    return %c0_i32, %c0_i32_0 : i32, i32
  }
  func.func @transform_8(%arg0: i32) -> (i32, i32) {
    %c0_i32 = arith.constant 0 : i32
    %c0_i32_0 = arith.constant 0 : i32
    %c0_i32_1 = arith.constant 0 : i32
    return %c0_i32, %c0_i32_0 : i32, i32
  }
  func.func @transform_9(%arg0: i32) -> (i32, i32) {
    %c0_i32 = arith.constant 0 : i32
    %c0_i32_0 = arith.constant 0 : i32
    %c0_i32_1 = arith.constant 0 : i32
    return %c0_i32, %c0_i32_0 : i32, i32
  }
  func.func @transform_10(%arg0: i32) -> (i32, i32) {
    %c0_i32 = arith.constant 0 : i32
    %c0_i32_0 = arith.constant 0 : i32
    %c0_i32_1 = arith.constant 0 : i32
    return %c0_i32, %c0_i32_0 : i32, i32
  }
  func.func @transform_11(%arg0: i32) -> (i32, i32, i32) {
    %c0_i32 = arith.constant 0 : i32
    %c0_i32_0 = arith.constant 0 : i32
    %c0_i32_1 = arith.constant 0 : i32
    %c0_i32_2 = arith.constant 0 : i32
    return %c0_i32, %c0_i32_0, %c0_i32_1 : i32, i32, i32
  }
  func.func @transform_12(%arg0: i32) -> (i32, i32) {
    %c0_i32 = arith.constant 0 : i32
    %c0_i32_0 = arith.constant 0 : i32
    %c0_i32_1 = arith.constant 0 : i32
    return %c0_i32, %c0_i32_0 : i32, i32
  }
  func.func @transform_13(%arg0: i32) -> (i32, i32, i32) {
    %c0_i32 = arith.constant 0 : i32
    %c0_i32_0 = arith.constant 0 : i32
    %c0_i32_1 = arith.constant 0 : i32
    %c0_i32_2 = arith.constant 0 : i32
    return %c0_i32, %c0_i32_0, %c0_i32_1 : i32, i32, i32
  }
}

</mosaic_0001>

<llo_original>
// kernel: tpu_custom_call.1
$region0: #{tpu_custom_call.1}
  #allocation0 [shape = 'u32[]', space=smem, size = 0x4, offset = 0x4, fixed_abs, tag = 'smem constant byte address 0x4 - core index']
  #allocation1 [shape = 'u32[72,128]{1,0:T(1,128)}', space=vmem, size = 0x9000, scoped, tag = 'internal scratch']
  %s0 = inlined_call_operand.vmem [shape: f32[2,8,32], index: 0, kind: input, shape index: {}]
  %s1 = inlined_call_operand.hbm [shape: f32[2,8,96], index: 1, kind: input, shape index: {}]
  %s2 = inlined_call_operand.vmem [shape: f32[1,2,96], index: 2, kind: input, shape index: {}]
  %s3 = inlined_call_operand.vmem [shape: f32[2,32], index: 3, kind: input, shape index: {}]
  %s4 = inlined_call_operand.hbm [shape: f32[1,32], index: 4, kind: input, shape index: {}]
  %s5 = inlined_call_operand.vmem [shape: f32[32,128], index: 5, kind: input, shape index: {}]
  %s6 = inlined_call_operand.vmem [shape: f32[1,96], index: 6, kind: input, shape index: {}]
  %s7 = inlined_call_operand.hbm [shape: f32[32,32], index: 7, kind: input, shape index: {}]
  %s8 = inlined_call_operand.vmem [shape: f32[1,32], index: 8, kind: input, shape index: {}]
  %s9 = inlined_call_operand.vmem [shape: f32[32,16], index: 9, kind: input, shape index: {}]
  %s10 = inlined_call_operand.vmem [shape: f32[1,16], index: 10, kind: input, shape index: {}]
  %s11 = inlined_call_operand.hbm [shape: f32[1,2,16], index: 11, kind: output, shape index: {0}]
  %s12 = inlined_call_operand.hbm [shape: f32[2,32], index: 12, kind: output, shape index: {1}]
  %s13 = inlined_call_operand.hbm [shape: f32[1,2,8], index: 13, kind: output, shape index: {2}]
  %14 = xla_tuple %s11, %s12, %s13
  %s15 = sld [smem:[#allocation0]]
  $region82: #{tpu_custom_call.1} parent=0
    _
  %s17 = ssub.s32 1, %s15
  %s18 = scalar_select 0, %s17, %s15
  $region1: #{tpu_custom_call.1} parent=0
    #allocation2 [shape = 'u8[8192]{0}', space=vmem, size = 0x2000, scoped, tag = 'input window, operand 1, single buffered']
    #allocation3 [shape = 's32[1]{0}', space=sflag, size = 0x4, scoped, tag = 'scoped memory for tpu_custom_call.1']
    #allocation4 [shape = 's32[1]{0}', space=sflag, size = 0x4, scoped, tag = 'scoped memory for tpu_custom_call.1']
    #allocation5 [shape = 'u8[512]{0}', space=vmem, size = 0x400, scoped, tag = 'input window, operand 4, single buffered']
    #allocation6 [shape = 's32[1]{0}', space=sflag, size = 0x4, scoped, tag = 'scoped memory for tpu_custom_call.1']
    #allocation7 [shape = 'u8[16384]{0}', space=vmem, size = 0x4000, scoped, tag = 'input window, operand 7, single buffered']
    #allocation8 [shape = 'u8[1024]{0}', space=vmem, size = 0x400, scoped, tag = 'output window, operand 0, single buffered']
    #allocation9 [shape = 'u8[1024]{0}', space=vmem, size = 0x400, scoped, tag = 'output window, operand 1, single buffered']
    #allocation10 [shape = 's32[1]{0}', space=sflag, size = 0x4, scoped, tag = 'scoped memory for tpu_custom_call.1']
    #allocation11 [shape = 'u8[1024]{0}', space=vmem, size = 0x400, scoped, tag = 'output window, operand 2, single buffered']
    %19 = vsyncpa [#allocation3], 0
    %20 = vsyncpa [#allocation6], 0
    %21 = vsyncpa [#allocation4], 0
    %22 = vsyncpa [#allocation10], 0
    // Predicated region
    $region2: #{tpu_custom_call.1} parent=1 // pred_check
      _
    $region3: #{tpu_custom_call.1} parent=1 // pred_check_branch
      %24 = sbr.rel (0) target = $region5
    $region4: #{tpu_custom_call.1} parent=1 // pred_region
      _
    $region5: #{tpu_custom_call.1} parent=1 // pred_fallthru
      _
    // Predicated region
    $region6: #{tpu_custom_call.1} parent=1 // pred_check
      _
    $region7: #{tpu_custom_call.1} parent=1 // pred_check_branch
      %26 = sbr.rel (0) target = $region9
    $region8: #{tpu_custom_call.1} parent=1 // pred_region
      %28 = vsyncadd [#allocation3], 0
      %s29 = sshll.u32 %s1, 4
      %s30 = int_to_ptr.hbm [resolvable:$true] %s29
      %s31 = sshll.u32 [#allocation2], 4
      %s32 = int_to_ptr.vmem [resolvable:$true] %s31
      %37 = dma.hbm_to_vmem [thread:$0]  %s30, 256, %s32, [#allocation3], 128, 128, 8
    $region9: #{tpu_custom_call.1} parent=1 // pred_fallthru
      _
    // Predicated region
    $region10: #{tpu_custom_call.1} parent=1 // pred_check
      _
    $region11: #{tpu_custom_call.1} parent=1 // pred_check_branch
      %39 = sbr.rel (0) target = $region13
    $region12: #{tpu_custom_call.1} parent=1 // pred_region
      _
    $region13: #{tpu_custom_call.1} parent=1 // pred_fallthru
      _
    // Predicated region
    $region14: #{tpu_custom_call.1} parent=1 // pred_check
      _
    $region15: #{tpu_custom_call.1} parent=1 // pred_check_branch
      %41 = sbr.rel (0) target = $region17
    $region16: #{tpu_custom_call.1} parent=1 // pred_region
      _
    $region17: #{tpu_custom_call.1} parent=1 // pred_fallthru
      _
    // Predicated region
    $region18: #{tpu_custom_call.1} parent=1 // pred_check
      _
    $region19: #{tpu_custom_call.1} parent=1 // pred_check_branch
      %43 = sbr.rel (0) target = $region21
    $region20: #{tpu_custom_call.1} parent=1 // pred_region
      %45 = vsyncadd [#allocation6], 0
      %s47 = sshll.u32 %s4, 4
      %s48 = int_to_ptr.hbm [resolvable:$true] %s47
      %s49 = sshll.u32 [#allocation5], 4
      %s50 = int_to_ptr.vmem [resolvable:$true] %s49
      %52 = dma.hbm_to_vmem [thread:$0]  %s48, 16, %s50, [#allocation6]
    $region21: #{tpu_custom_call.1} parent=1 // pred_fallthru
      _
    // Predicated region
    $region22: #{tpu_custom_call.1} parent=1 // pred_check
      _
    $region23: #{tpu_custom_call.1} parent=1 // pred_check_branch
      %54 = sbr.rel (0) target = $region25
    $region24: #{tpu_custom_call.1} parent=1 // pred_region
      _
    $region25: #{tpu_custom_call.1} parent=1 // pred_fallthru
      _
    // Predicated region
    $region26: #{tpu_custom_call.1} parent=1 // pred_check
      _
    $region27: #{tpu_custom_call.1} parent=1 // pred_check_branch
      %56 = sbr.rel (0) target = $region29
    $region28: #{tpu_custom_call.1} parent=1 // pred_region
      _
    $region29: #{tpu_custom_call.1} parent=1 // pred_fallthru
      _
    // Predicated region
    $region30: #{tpu_custom_call.1} parent=1 // pred_check
      _
    $region31: #{tpu_custom_call.1} parent=1 // pred_check_branch
      %58 = sbr.rel (0) target = $region33
    $region32: #{tpu_custom_call.1} parent=1 // pred_region
      %60 = vsyncadd [#allocation6], 0
      %s61 = sshll.u32 %s7, 4
      %s62 = int_to_ptr.hbm [resolvable:$true] %s61
      %s63 = sshll.u32 [#allocation7], 4
      %s64 = int_to_ptr.vmem [resolvable:$true] %s63
      %69 = dma.hbm_to_vmem [thread:$0]  %s62, 512, %s64, [#allocation6], 128, 128, 8
    $region33: #{tpu_custom_call.1} parent=1 // pred_fallthru
      _
    // Predicated region
    $region34: #{tpu_custom_call.1} parent=1 // pred_check
      _
    $region35: #{tpu_custom_call.1} parent=1 // pred_check_branch
      %71 = sbr.rel (0) target = $region37
    $region36: #{tpu_custom_call.1} parent=1 // pred_region
      _
    $region37: #{tpu_custom_call.1} parent=1 // pred_fallthru
      _
    // Predicated region
    $region38: #{tpu_custom_call.1} parent=1 // pred_check
      _
    $region39: #{tpu_custom_call.1} parent=1 // pred_check_branch
      %73 = sbr.rel (0) target = $region41
    $region40: #{tpu_custom_call.1} parent=1 // pred_region
      _
    $region41: #{tpu_custom_call.1} parent=1 // pred_fallthru
      _
    // Predicated region
    $region42: #{tpu_custom_call.1} parent=1 // pred_check
      _
    $region43: #{tpu_custom_call.1} parent=1 // pred_check_branch
      %75 = sbr.rel (0) target = $region45
    $region44: #{tpu_custom_call.1} parent=1 // pred_region
      _
    $region45: #{tpu_custom_call.1} parent=1 // pred_fallthru
      _
    // Predicated region
    $region46: #{tpu_custom_call.1} parent=1 // pred_check
      _
    $region47: #{tpu_custom_call.1} parent=1 // pred_check_branch
      %77 = sbr.rel (0) target = $region49
    $region48: #{tpu_custom_call.1} parent=1 // pred_region
      %79 = dma.done [#allocation3], 256
    $region49: #{tpu_custom_call.1} parent=1 // pred_fallthru
      _
    // Predicated region
    $region50: #{tpu_custom_call.1} parent=1 // pred_check
      _
    $region51: #{tpu_custom_call.1} parent=1 // pred_check_branch
      %81 = sbr.rel (0) target = $region53
    $region52: #{tpu_custom_call.1} parent=1 // pred_region
      %83 = dma.done [#allocation6], 16
    $region53: #{tpu_custom_call.1} parent=1 // pred_fallthru
      _
    // Predicated region
    $region54: #{tpu_custom_call.1} parent=1 // pred_check
      _
    $region55: #{tpu_custom_call.1} parent=1 // pred_check_branch
      %85 = sbr.rel (0) target = $region57
    $region56: #{tpu_custom_call.1} parent=1 // pred_region
      %87 = dma.done [#allocation6], 512
    $region57: #{tpu_custom_call.1} parent=1 // pred_fallthru
      _
    %v88 = vld [vmem:[%s0] sm:$0xff]
    %v89 = vld [vmem:[%s0 + $0x8] sm:$0xff]
    %v90 = vld [vmem:[#allocation2] sm:$0xff]
    %v91 = vld [vmem:[#allocation2 + $0x8] sm:$0xff]
    %v92 = vld [vmem:[#allocation5] sm:$0x1]
    %v93 = vld [vmem:[%s5] sm:$0xff]
    %v94 = vld [vmem:[%s5 + $0x8] sm:$0xff]
    %v95 = vld [vmem:[%s5 + $0x10] sm:$0xff]
    %v96 = vld [vmem:[%s5 + $0x18] sm:$0xff]
    %v97 = vld [vmem:[%s6] sm:$0x1]
    %v98 = vld [vmem:[#allocation7] sm:$0xff]
    %v99 = vld [vmem:[#allocation7 + $0x8] sm:$0xff]
    %v100 = vld [vmem:[#allocation7 + $0x10] sm:$0xff]
    %v101 = vld [vmem:[#allocation7 + $0x18] sm:$0xff]
    %v102 = vld [vmem:[%s8] sm:$0x1]
    %v103 = vld [vmem:[%s9] sm:$0xff]
    %v104 = vld [vmem:[%s9 + $0x8] sm:$0xff]
    %v105 = vld [vmem:[%s9 + $0x10] sm:$0xff]
    %v106 = vld [vmem:[%s9 + $0x18] sm:$0xff]
    %v107 = vld [vmem:[%s10] sm:$0x1]
    %v108 = vld [vmem:[%s3] sm:$0x3]
    %vm109 = vcmask 261120
    %v111 = vsel %vm109, %v108, 0
    %113 = vmatpush.msra.mxu0 0.0
    %114 = vmatpush.msra.mxu0 0.0
    %115 = vmatpush.msra.mxu0 0.0
    %116 = vmatpush.msra.mxu0 0.0
    %117 = vmatpush.msra.mxu0 0.0
    %118 = vmatpush.msra.mxu0 0.0
    %119 = vmatpush.msra.mxu0 0.0
    %120 = vmatpush.msra.mxu0 0.0
    %121 = vmatpush.msra.mxu0 0.0
    %122 = vmatpush.msra.mxu0 0.0
    %123 = vmatpush.msra.mxu0 0.0
    %124 = vmatpush.msra.mxu0 0.0
    %125 = vmatpush.msra.mxu0 %v96
    %126 = vmatpush.msra.mxu0 %v95
    %127 = vmatpush.msra.mxu0 %v94
    %128 = vmatpush.msra.mxu0 %v93
    %129 = vmatmul.f32.gmra.mxu0 %v111
    %v130 = vpop.f32.mrf.mxu0
    %v131 = vadd.f32 0.0, %v130
    %132 = vdwg.mxu0
    %v134 = vperm.slane %v97, 0
    %135 = vrot.lane.b32.xlu0 %v134, 32
    %v136 = vpop.permute.xlu0 %135
    %v138 = vadd.f32 %v131, %v136
    %v140 = vrot.slane %v131, 1
    %v141 = vperm.slane %v131, 0
    %v142 = vperm.slane %v140, 0
    %v145 = vadd.f32 %v88, %v141
    %v146 = vadd.f32 %v89, %v142
    %v147 = vtanh.pop %v145
    %v148 = vtanh.pop %v146
    %v150 = vperm.slane %v92, 0
    %v152 = vmul.f32 %v147, %v150
    %v153 = vmul.f32 %v148, %v150
    %v154 = vsel %vm109, %v152, 0.0
    %155 = vadd.xlane.f32.xlu0 %v154
    %v156 = vpop.xlane.xlu0 %155
    %v157 = vsel %vm109, %v153, 0.0
    %158 = vadd.xlane.f32.xlu0 %v157
    %v159 = vpop.xlane.xlu0 %158
    %v162 = vlaneseq
    %v163 = vand.u32 %v162, 127
    %v164 = vperm.slane %v156, %v163
    %v165 = vperm.slane %v159, %v163
    %vm166 = vcmask 1041409
    %v167 = vsel %vm166, %v165, %v164
    %vm169 = vcmask 58368
    %v170 = vsel %vm169, %v167, -inf
    %171 = vmax.xlane.f32.xlu0 %v170
    %v172 = vpop.xlane.xlu0 %171
    %v174 = vperm.slane %v172, 0
    %v175 = vperm.slane %v172, 1
    %v178 = vsub.f32 %v156, %v174
    %v179 = vsub.f32 %v159, %v175
    %v180 = vmul.f32 %v178, 1.442695
    %v181 = vpow.pop %v180
    %v182 = vmul.f32 %v179, 1.442695
    %v183 = vpow.pop %v182
    %186 = vset.pattern.permute.xlu0 0
    %187 = vperm.xlu0 %186, %v181
    %v188 = vpop.permute.xlu0 %187
    %189 = vset.pattern.permute.xlu0 0
    %190 = vperm.xlu0 %189, %v183
    %v191 = vpop.permute.xlu0 %190
    %v192 = vperm.slane %v188, %v163
    %v193 = vperm.slane %v191, %v163
    %v194 = vsel %vm166, %v193, %v192
    %v196 = vsel %vm169, %v194, 0.0
    %197 = vadd.xlane.f32.xlu0 %v196
    %v198 = vpop.xlane.xlu0 %197
    %v200 = vperm.slane %v198, 0
    %v201 = vperm.slane %v198, 1
    %v204 = vrcp.pop %v200
    %v205 = vmul.f32 %v200, %v204
    %v206 = vsub.f32 1.0, %v205
    %v207 = vmul.f32 %v204, %v206
    %v208 = vadd.f32 %v204, %v207
    %vm209 = vweird.f32 %v200
    %vm210 = vweird.f32 %v204
    %vm211 = vmor %vm209, %vm210
    %v212 = vsel %vm211, %v204, %v208
    %v213 = vand.u32 2147483647, %v200
    %vm214 = vcmp.eq.f32.partialorder %v213, 8.507059e+37
    %v215 = vand.u32 %v200, 2147483648
    %v216 = vor.u32 1.1754944e-38, %v215
    %v217 = vsel %vm214, %v216, %v212
    %v218 = vmul.f32 %v181, %v217
    %v219 = vrcp.pop %v201
    %v220 = vmul.f32 %v201, %v219
    %v221 = vsub.f32 1.0, %v220
    %v222 = vmul.f32 %v219, %v221
    %v223 = vadd.f32 %v219, %v222
    %vm224 = vweird.f32 %v201
    %vm225 = vweird.f32 %v219
    %vm226 = vmor %vm224, %vm225
    %v227 = vsel %vm226, %v219, %v223
    %v228 = vand.u32 2147483647, %v201
    %vm229 = vcmp.eq.f32.partialorder %v228, 8.507059e+37
    %v230 = vand.u32 %v201, 2147483648
    %v231 = vor.u32 1.1754944e-38, %v230
    %v232 = vsel %vm229, %v231, %v227
    %v233 = vmul.f32 %v183, %v232
    %235 = vset.pattern.permute.xlu0 0
    %236 = vperm.xlu0 %235, %v218
    %v237 = vpop.permute.xlu0 %236
    %240 = vset.pattern.permute.xlu0 0
    %241 = vperm.xlu0 %240, %v233
    %v242 = vpop.permute.xlu0 %241
    %v244 = vmul.f32 %v237, %v90
    %v245 = vmul.f32 %v242, %v91
    %vm246 = vcmask 785408
    %v247 = vsel %vm246, %v244, 0.0
    %v248 = vrot.slane %v247, 4
    %v249 = vadd.f32 %v247, %v248
    %v250 = vrot.slane %v249, 2
    %v251 = vadd.f32 %v249, %v250
    %v252 = vrot.slane %v251, 1
    %v253 = vadd.f32 %v251, %v252
    %v254 = vsel %vm246, %v245, 0.0
    %v255 = vrot.slane %v254, 4
    %v256 = vadd.f32 %v254, %v255
    %v257 = vrot.slane %v256, 2
    %v258 = vadd.f32 %v256, %v257
    %v259 = vrot.slane %v258, 1
    %v260 = vadd.f32 %v258, %v259
    %v261 = vld [vmem:[%s2] sm:$0x3]
    %v263 = vrot.slane %v261, 1
    %v266 = vadd.f32 %v253, %v261
    %v267 = vadd.f32 %v260, %v263
    %v269 = vrot.slane %v138, 1
    %270 = vrot.lane.b32.xlu0 %v138, 96
    %v271 = vpop.permute.xlu0 %270
    %272 = vrot.lane.b32.xlu0 %v269, 96
    %v273 = vpop.permute.xlu0 %272
    %v276 = vadd.f32 %v266, %v271
    %v277 = vadd.f32 %v267, %v273
    %v278 = vxor.u32 %v276, 2147483648
    %v279 = vxor.u32 %v277, 2147483648
    %v280 = vmul.f32 %v278, 1.442695
    %v281 = vpow.pop %v280
    %v282 = vmul.f32 %v279, 1.442695
    %v283 = vpow.pop %v282
    %v284 = vadd.f32 %v281, 1.0
    %v285 = vadd.f32 %v283, 1.0
    %v286 = vrcp.pop %v284
    %v287 = vmul.f32 %v284, %v286
    %v288 = vsub.f32 1.0, %v287
    %v289 = vmul.f32 %v286, %v288
    %v290 = vadd.f32 %v286, %v289
    %vm291 = vweird.f32 %v284
    %vm292 = vweird.f32 %v286
    %vm293 = vmor %vm291, %vm292
    %v294 = vsel %vm293, %v286, %v290
    %v295 = vand.u32 2147483647, %v284
    %vm296 = vcmp.eq.f32.partialorder %v295, 8.507059e+37
    %v297 = vand.u32 %v284, 2147483648
    %v298 = vor.u32 1.1754944e-38, %v297
    %v299 = vsel %vm296, %v298, %v294
    %v300 = vmul.f32 1.0, %v299
    %v301 = vrcp.pop %v285
    %v302 = vmul.f32 %v285, %v301
    %v303 = vsub.f32 1.0, %v302
    %v304 = vmul.f32 %v301, %v303
    %v305 = vadd.f32 %v301, %v304
    %vm306 = vweird.f32 %v285
    %vm307 = vweird.f32 %v301
    %vm308 = vmor %vm306, %vm307
    %v309 = vsel %vm308, %v301, %v305
    %v310 = vand.u32 2147483647, %v285
    %vm311 = vcmp.eq.f32.partialorder %v310, 8.507059e+37
    %v312 = vand.u32 %v285, 2147483648
    %v313 = vor.u32 1.1754944e-38, %v312
    %v314 = vsel %vm311, %v313, %v309
    %v315 = vmul.f32 1.0, %v314
    %316 = vrot.lane.b32.xlu0 %v138, 32
    %v317 = vpop.permute.xlu0 %316
    %318 = vrot.lane.b32.xlu0 %v269, 32
    %v319 = vpop.permute.xlu0 %318
    %v322 = vmul.f32 %v300, %v317
    %v323 = vmul.f32 %v315, %v319
    %326 = vrot.lane.b32.xlu0 %v322, 64
    %v327 = vpop.permute.xlu0 %326
    %328 = vrot.lane.b32.xlu0 %v323, 64
    %v329 = vpop.permute.xlu0 %328
    %v332 = vadd.f32 %v266, %v327
    %v333 = vadd.f32 %v267, %v329
    %v334 = vtanh.pop %v332
    %v335 = vtanh.pop %v333
    %v336 = vsub.f32 1.0, %v300
    %v337 = vsub.f32 1.0, %v315
    %340 = vrot.lane.b32.xlu0 %v334, 96
    %v341 = vpop.permute.xlu0 %340
    %342 = vrot.lane.b32.xlu0 %v335, 96
    %v343 = vpop.permute.xlu0 %342
    %v346 = vmul.f32 %v336, %v341
    %v347 = vmul.f32 %v337, %v343
    %v348 = vrot.slane %v108, 1
    %349 = vrot.lane.b32.xlu0 %v108, 32
    %v350 = vpop.permute.xlu0 %349
    %351 = vrot.lane.b32.xlu0 %v348, 32
    %v352 = vpop.permute.xlu0 %351
    %v355 = vmul.f32 %v300, %v350
    %v356 = vmul.f32 %v315, %v352
    %v357 = vadd.f32 %v346, %v355
    %v358 = vadd.f32 %v347, %v356
    %v360 = vperm.slane %v102, 0
    %v364 = vrot.slane %v358, 7
    %v365 = vsel %vm166, %v364, %v357
    %366 = vrot.lane.b32.xlu0 %v365, 96
    %v367 = vpop.permute.xlu0 %366
    %v368 = vsel %vm109, %v367, 0
    %370 = vmatpush.msra.mxu0 0.0
    %371 = vmatpush.msra.mxu0 0.0
    %372 = vmatpush.msra.mxu0 0.0
    %373 = vmatpush.msra.mxu0 0.0
    %374 = vmatpush.msra.mxu0 0.0
    %375 = vmatpush.msra.mxu0 0.0
    %376 = vmatpush.msra.mxu0 0.0
    %377 = vmatpush.msra.mxu0 0.0
    %378 = vmatpush.msra.mxu0 0.0
    %379 = vmatpush.msra.mxu0 0.0
    %380 = vmatpush.msra.mxu0 0.0
    %381 = vmatpush.msra.mxu0 0.0
    %382 = vmatpush.msra.mxu0 %v101
    %383 = vmatpush.msra.mxu0 %v100
    %384 = vmatpush.msra.mxu0 %v99
    %385 = vmatpush.msra.mxu0 %v98
    %386 = vmatmul.f32.gmra.mxu0 %v368
    %v387 = vpop.f32.mrf.mxu0
    %v388 = vadd.f32 %v360, %v387
    %389 = vdwg.mxu0
    %vm390 = vcmp.gt.f32.partialorder %v388, 0.0
    %v391 = vmul.f32 %v388, 0.01
    %v392 = vsel %vm390, %v388, %v391
    %v394 = vperm.slane %v107, 0
    %v397 = vsel %vm109, %v392, 0
    %399 = vmatpush.msra.mxu0 0.0
    %400 = vmatpush.msra.mxu0 0.0
    %401 = vmatpush.msra.mxu0 0.0
    %402 = vmatpush.msra.mxu0 0.0
    %403 = vmatpush.msra.mxu0 0.0
    %404 = vmatpush.msra.mxu0 0.0
    %405 = vmatpush.msra.mxu0 0.0
    %406 = vmatpush.msra.mxu0 0.0
    %407 = vmatpush.msra.mxu0 0.0
    %408 = vmatpush.msra.mxu0 0.0
    %409 = vmatpush.msra.mxu0 0.0
    %410 = vmatpush.msra.mxu0 0.0
    %411 = vmatpush.msra.mxu0 %v106
    %412 = vmatpush.msra.mxu0 %v105
    %413 = vmatpush.msra.mxu0 %v104
    %414 = vmatpush.msra.mxu0 %v103
    %415 = vmatmul.f32.gmra.mxu0 %v397
    %v416 = vpop.f32.mrf.mxu0
    %v417 = vadd.f32 %v394, %v416
    %418 = vdwg.mxu0
    %vm419 = vcmask 123904
    %420 = vst.msk [vmem:[#allocation8] sm:$0x3] %vm419, %v417
    %v421 = vperm.slane %v237, %v163
    %v422 = vperm.slane %v242, %v163
    %v423 = vsel %vm166, %v422, %v421
    %425 = vst.msk [vmem:[#allocation11] sm:$0x3] %vm169, %v423
    %vm427 = vcmask 254976
    %428 = vst.msk [vmem:[#allocation9] sm:$0x3] %vm427, %v367
    // Predicated region
    $region58: #{tpu_custom_call.1} parent=1 // pred_check
      _
    $region59: #{tpu_custom_call.1} parent=1 // pred_check_branch
      %430 = sbr.rel (0) target = $region61
    $region60: #{tpu_custom_call.1} parent=1 // pred_region
      %432 = vsyncadd [#allocation4], 0
      %s434 = sshll.u32 [#allocation8], 4
      %s435 = int_to_ptr.vmem [resolvable:$true] %s434
      %s436 = sshll.u32 %s11, 4
      %s437 = int_to_ptr.hbm [resolvable:$true] %s436
      %439 = dma.vmem_to_hbm [thread:$0]  %s435, 32, %s437, [#allocation4]
    $region61: #{tpu_custom_call.1} parent=1 // pred_fallthru
      _
    // Predicated region
    $region62: #{tpu_custom_call.1} parent=1 // pred_check
      _
    $region63: #{tpu_custom_call.1} parent=1 // pred_check_branch
      %441 = sbr.rel (0) target = $region65
    $region64: #{tpu_custom_call.1} parent=1 // pred_region
      %443 = vsyncadd [#allocation10], 0
      %s445 = sshll.u32 [#allocation9], 4
      %s446 = int_to_ptr.vmem [resolvable:$true] %s445
      %s447 = sshll.u32 %s12, 4
      %s448 = int_to_ptr.hbm [resolvable:$true] %s447
      %450 = dma.vmem_to_hbm [thread:$0]  %s446, 32, %s448, [#allocation10]
    $region65: #{tpu_custom_call.1} parent=1 // pred_fallthru
      _
    // Predicated region
    $region66: #{tpu_custom_call.1} parent=1 // pred_check
      _
    $region67: #{tpu_custom_call.1} parent=1 // pred_check_branch
      %452 = sbr.rel (0) target = $region69
    $region68: #{tpu_custom_call.1} parent=1 // pred_region
      %454 = vsyncadd [#allocation10], 0
      %s456 = sshll.u32 [#allocation11], 4
      %s457 = int_to_ptr.vmem [resolvable:$true] %s456
      %s458 = sshll.u32 %s13, 4
      %s459 = int_to_ptr.hbm [resolvable:$true] %s458
      %461 = dma.vmem_to_hbm [thread:$0]  %s457, 32, %s459, [#allocation10]
    $region69: #{tpu_custom_call.1} parent=1 // pred_fallthru
      _
    // Predicated region
    $region70: #{tpu_custom_call.1} parent=1 // pred_check
      _
    $region71: #{tpu_custom_call.1} parent=1 // pred_check_branch
      %463 = sbr.rel (0) target = $region73
    $region72: #{tpu_custom_call.1} parent=1 // pred_region
      %465 = dma.done [#allocation4], 32
    $region73: #{tpu_custom_call.1} parent=1 // pred_fallthru
      _
    // Predicated region
    $region74: #{tpu_custom_call.1} parent=1 // pred_check
      _
    $region75: #{tpu_custom_call.1} parent=1 // pred_check_branch
      %467 = sbr.rel (0) target = $region77
    $region76: #{tpu_custom_call.1} parent=1 // pred_region
      %469 = dma.done [#allocation10], 32
    $region77: #{tpu_custom_call.1} parent=1 // pred_fallthru
      _
    // Predicated region
    $region78: #{tpu_custom_call.1} parent=1 // pred_check
      _
    $region79: #{tpu_custom_call.1} parent=1 // pred_check_branch
      %471 = sbr.rel (0) target = $region81
    $region80: #{tpu_custom_call.1} parent=1 // pred_region
      %473 = dma.done [#allocation10], 32
    $region81: #{tpu_custom_call.1} parent=1 // pred_fallthru
      _
    %474 = vsyncpa [#allocation3], 1
    %475 = vsyncpa [#allocation6], 1
    %476 = vsyncpa [#allocation4], 1
    %477 = vsyncpa [#allocation10], 1

</llo_original>
